<compile_context>
chip_gen: v6e
topology: v6e:2x2x1
jax: 0.10.0
libtpu: 0.0.40
codegen_flags: <defaults>
</compile_context>

<pallas_src>
import functools

import jax
import jax.numpy as jnp
from jax import lax
from jax.experimental import pallas as pl
from jax.experimental.pallas import tpu as pltpu


def _round_up(n, m):
    return ((n + m - 1) // m) * m


def _critic_kernel(x_ref, w1_ref, b1_ref, w2_ref, b2_ref, w3_ref, b3_ref, o_ref):
    # Matmul operands follow x's dtype (f32 or bf16); MXU accumulation is f32 and
    # all elementwise work (bias add / ReLU) stays f32.
    x = x_ref[...]                                                     # (TB, obs)
    h1 = jnp.dot(x, w1_ref[...], preferred_element_type=jnp.float32)  # (TB, H) f32
    h1 = jnp.maximum(h1 + b1_ref[...], 0.0)                           # ReLU, f32
    h2 = jnp.dot(h1.astype(w2_ref.dtype), w2_ref[...],
                 preferred_element_type=jnp.float32)                  # (TB, H) f32
    h2 = jnp.maximum(h2 + b2_ref[...], 0.0)                           # ReLU, f32
    # Lane-dense N=1 head: (1, H) . (TB, H)^T -> (1, TB) on the MXU. Keeps the
    # output a dense row of lanes instead of (TB, 1) masked stores + XLU reduces.
    head = lax.dot_general(w3_ref[...], h2,
                           dimension_numbers=(((1,), (1,)), ((), ())),
                           preferred_element_type=jnp.float32)        # (1, TB)
    o_ref[...] = (head + b3_ref[...]).astype(o_ref.dtype)


@functools.partial(jax.jit, static_argnames=("block_b",))
def model_critic_forward(x, params, *, block_b=8192):
    """x: (B, obs_size) f32 or bf16. params: dict of w1,b1,w2,b2,w3,b3 (torch-transposed)."""
    B, obs = x.shape
    hidden = params["w1"].shape[1]

    # Matmul operand dtype follows x; weights are tiny so casting here is free.
    mm_dtype = x.dtype
    w1 = params["w1"].astype(mm_dtype)                               # (obs, H)
    w2 = params["w2"].astype(mm_dtype)                               # (H, H)
    w3_row = params["w3"].reshape(1, hidden).astype(jnp.float32)     # (1, H) f32 head
    b1 = params["b1"].astype(jnp.float32)                            # (1, H)
    b2 = params["b2"].astype(jnp.float32)                            # (1, H)
    b3 = params["b3"].astype(jnp.float32)                            # (1, 1)

    # Batch tile: multiple of 128 (lane-dense output row), large enough to amortise
    # per-grid-step overhead against the x DMA; shrunk so the grid has >= 2 steps
    # (feeds both TensorCores on v7x) when B allows it.
    tb = min(_round_up(block_b, 128), _round_up(B, 128))
    if B > 128 and pl.cdiv(B, tb) < 2:
        tb = _round_up(pl.cdiv(B, 2), 128)
    grid = (pl.cdiv(B, tb),)
    b_pad = grid[0] * tb                       # output is padded; input x is NOT padded

    x_elem = jnp.dtype(mm_dtype).itemsize
    # Scoped-VMEM budget: double-buffered lane-padded x tile (obs pads to 128 lanes)
    # plus generous room for f32 intermediates (h1/h2 pad 64 -> 128 lanes). Clamp to
    # 48 MiB to stay under v7x's 64 MiB physical; raises v5e's 16 MiB default.
    vmem_limit = min(48 << 20,
                     max(32 << 20,
                         2 * tb * 128 * x_elem + 8 * tb * 128 * 4 + (8 << 20)))

    weight_bytes = (obs * hidden + hidden * hidden) * x_elem + (3 * hidden + 1) * 4
    cost = pl.CostEstimate(
        flops=2 * b_pad * (obs * hidden + hidden * hidden + hidden),
        transcendentals=0,
        bytes_accessed=B * obs * x_elem + b_pad * 4 + weight_bytes,
    )

    resident = lambda shape: pl.BlockSpec(shape, lambda i: (0, 0))

    out_padded = pl.pallas_call(
        _critic_kernel,
        out_shape=jax.ShapeDtypeStruct((1, b_pad), jnp.float32),
        grid=grid,
        in_specs=[
            pl.BlockSpec((tb, obs), lambda i: (i, 0)),   # x: streamed per batch tile
            resident(w1.shape), resident(b1.shape),      # weights/biases: VMEM-resident
            resident(w2.shape), resident(b2.shape),
            resident(w3_row.shape), resident(b3.shape),
        ],
        out_specs=pl.BlockSpec((1, tb), lambda i: (0, i)),   # lane-dense output row
        compiler_params=pltpu.CompilerParams(
            dimension_semantics=("parallel",),           # shard batch tiles across TCs (v7x)
            vmem_limit_bytes=vmem_limit,
        ),
        cost_estimate=cost,
    )(x, w1, b1, w2, b2, w3_row, b3)

    # Rows past B hold unspecified data (partial final x tile) -- slice them off.
    return out_padded[0, :B].reshape(B, 1)


def init_params(key, obs_size, hidden=64):
    """Deterministic init mimicking torch.nn.Linear default (uniform +/- 1/sqrt(fan_in))."""
    ks = jax.random.split(key, 6)

    def lin(kw, kb, fan_in, fan_out):
        bound = 1.0 / jnp.sqrt(jnp.float32(fan_in))
        w = jax.random.uniform(kw, (fan_in, fan_out), jnp.float32, -bound, bound)
        b = jax.random.uniform(kb, (1, fan_out), jnp.float32, -bound, bound)
        return w, b

    w1, b1 = lin(ks[0], ks[1], obs_size, hidden)
    w2, b2 = lin(ks[2], ks[3], hidden, hidden)
    w3, b3 = lin(ks[4], ks[5], hidden, 1)
    return {"w1": w1, "b1": b1, "w2": w2, "b2": b2, "w3": w3, "b3": b3}


def _reference(x, p):
    h1 = jnp.maximum(x @ p["w1"] + p["b1"], 0.0)
    h2 = jnp.maximum(h1 @ p["w2"] + p["b2"], 0.0)
    return h2 @ p["w3"] + p["b3"]


if __name__ == "__main__":
    key = jax.random.PRNGKey(0)
    k_x, k_x2, k_x3, k_p = jax.random.split(key, 4)

    obs_size = 32
    params = init_params(k_p, obs_size)

    # Small demo batch: single grid step.
    x = jax.random.normal(k_x, (8, obs_size), jnp.float32)
    out = jax.block_until_ready(model_critic_forward(x, params))
    ref = _reference(x, params)
    assert out.shape == (8, 1), out.shape
    assert jnp.allclose(out, ref, atol=1e-4, rtol=1e-4), (out, ref)

    # Ragged batch: exercises the partial-final-tile path (no wrapper-side pad).
    x2 = jax.random.normal(k_x2, (13, obs_size), jnp.float32)
    out2 = jax.block_until_ready(model_critic_forward(x2, params))
    ref2 = _reference(x2, params)
    assert out2.shape == (13, 1), out2.shape
    assert jnp.allclose(out2, ref2, atol=1e-4, rtol=1e-4), (out2, ref2)

    # Batch > 128: tile shrinks so the grid has >= 2 "parallel" steps (v7x TCs).
    x3 = jax.random.normal(k_x3, (300, obs_size), jnp.float32)
    out3 = jax.block_until_ready(model_critic_forward(x3, params))
    ref3 = _reference(x3, params)
    assert out3.shape == (300, 1), out3.shape
    assert jnp.allclose(out3, ref3, atol=1e-4, rtol=1e-4), (out3, ref3)

    # Caller-supplied bf16 activations: operands stream at half width, accumulation
    # and elementwise stay f32. Loose tolerance (documented ~1e-2 relative error).
    out_bf16 = jax.block_until_ready(model_critic_forward(x.astype(jnp.bfloat16), params))
    assert out_bf16.shape == (8, 1), out_bf16.shape
    assert jnp.allclose(out_bf16, ref, atol=1e-1, rtol=1e-1), (out_bf16, ref)

    print("KERNEL_OK")
</pallas_src>

<mosaic_0001>
module attributes {stable_mosaic.version = 11 : i64} {
  func.func @_critic_kernel(%arg0: i32, %arg1: memref<128x32xf32, #tpu.memory_space<vmem>>, %arg2: memref<32x64xf32, #tpu.memory_space<vmem>>, %arg3: memref<1x64xf32, #tpu.memory_space<vmem>>, %arg4: memref<64x64xf32, #tpu.memory_space<vmem>>, %arg5: memref<1x64xf32, #tpu.memory_space<vmem>>, %arg6: memref<1x64xf32, #tpu.memory_space<vmem>>, %arg7: memref<1x1xf32, #tpu.memory_space<vmem>>, %arg8: memref<1x128xf32, #tpu.memory_space<vmem>>) attributes {dimension_semantics = [#tpu.dimension_semantics<parallel>], iteration_bounds = array<i64: 1>, scalar_prefetch = 0 : i64, scratch_operands = 0 : i64, tpu.core_type = #tpu.core_type<tc>, window_params = [{transform_indices = @transform_0, window_bounds = array<i64: 128, 32>}, {pipeline_mode = #tpu.pipeline_mode<synchronous>, transform_indices = @transform_1, window_bounds = array<i64: 32, 64>}, {pipeline_mode = #tpu.pipeline_mode<synchronous>, transform_indices = @transform_2, window_bounds = array<i64: 1, 64>}, {pipeline_mode = #tpu.pipeline_mode<synchronous>, transform_indices = @transform_3, window_bounds = array<i64: 64, 64>}, {pipeline_mode = #tpu.pipeline_mode<synchronous>, transform_indices = @transform_4, window_bounds = array<i64: 1, 64>}, {pipeline_mode = #tpu.pipeline_mode<synchronous>, transform_indices = @transform_5, window_bounds = array<i64: 1, 64>}, {pipeline_mode = #tpu.pipeline_mode<synchronous>, transform_indices = @transform_6, window_bounds = array<i64: 1, 1>}, {transform_indices = @transform_7, window_bounds = array<i64: 1, 128>}]} {
    %c0 = arith.constant 0 : index
    %c0_0 = arith.constant 0 : index
    %0 = vector.load %arg1[%c0, %c0_0] : memref<128x32xf32, #tpu.memory_space<vmem>>, vector<128x32xf32>
    %c0_1 = arith.constant 0 : index
    %c0_2 = arith.constant 0 : index
    %1 = vector.load %arg2[%c0_1, %c0_2] : memref<32x64xf32, #tpu.memory_space<vmem>>, vector<32x64xf32>
    %cst = arith.constant dense<0.000000e+00> : vector<128x64xf32>
    %2 = tpu.matmul %0, %1, %cst {dimension_numbers = #tpu.dot_dimension_numbers<[1], [0], [0], [1], [0, 0, 1, 1], [], []>} : vector<128x32xf32>, vector<32x64xf32>, vector<128x64xf32> -> vector<128x64xf32>
    %c0_3 = arith.constant 0 : index
    %c0_4 = arith.constant 0 : index
    %3 = vector.load %arg3[%c0_3, %c0_4] : memref<1x64xf32, #tpu.memory_space<vmem>>, vector<1x64xf32>
    %4 = vector.broadcast %3 : vector<1x64xf32> to vector<128x64xf32>
    %5 = arith.addf %2, %4 : vector<128x64xf32>
    %cst_5 = arith.constant 0.000000e+00 : f32
    %6 = vector.broadcast %cst_5 : f32 to vector<128x64xf32>
    %7 = arith.maximumf %5, %6 : vector<128x64xf32>
    %c0_6 = arith.constant 0 : index
    %c0_7 = arith.constant 0 : index
    %8 = vector.load %arg4[%c0_6, %c0_7] : memref<64x64xf32, #tpu.memory_space<vmem>>, vector<64x64xf32>
    %cst_8 = arith.constant dense<0.000000e+00> : vector<128x64xf32>
    %9 = tpu.matmul %7, %8, %cst_8 {dimension_numbers = #tpu.dot_dimension_numbers<[1], [0], [0], [1], [0, 0, 1, 1], [], []>} : vector<128x64xf32>, vector<64x64xf32>, vector<128x64xf32> -> vector<128x64xf32>
    %c0_9 = arith.constant 0 : index
    %c0_10 = arith.constant 0 : index
    %10 = vector.load %arg5[%c0_9, %c0_10] : memref<1x64xf32, #tpu.memory_space<vmem>>, vector<1x64xf32>
    %11 = vector.broadcast %10 : vector<1x64xf32> to vector<128x64xf32>
    %12 = arith.addf %9, %11 : vector<128x64xf32>
    %cst_11 = arith.constant 0.000000e+00 : f32
    %13 = vector.broadcast %cst_11 : f32 to vector<128x64xf32>
    %14 = arith.maximumf %12, %13 : vector<128x64xf32>
    %c0_12 = arith.constant 0 : index
    %c0_13 = arith.constant 0 : index
    %15 = vector.load %arg6[%c0_12, %c0_13] : memref<1x64xf32, #tpu.memory_space<vmem>>, vector<1x64xf32>
    %cst_14 = arith.constant dense<0.000000e+00> : vector<1x128xf32>
    %16 = tpu.matmul %15, %14, %cst_14 {dimension_numbers = #tpu.dot_dimension_numbers<[1], [1], [0], [0], [0, 0, 1, 0], [], []>} : vector<1x64xf32>, vector<128x64xf32>, vector<1x128xf32> -> vector<1x128xf32>
    %c0_15 = arith.constant 0 : index
    %c0_16 = arith.constant 0 : index
    %17 = vector.load %arg7[%c0_15, %c0_16] : memref<1x1xf32, #tpu.memory_space<vmem>>, vector<1x1xf32>
    %18 = vector.broadcast %17 : vector<1x1xf32> to vector<1x128xf32>
    %19 = arith.addf %16, %18 : vector<1x128xf32>
    %c0_17 = arith.constant 0 : index
    %c0_18 = arith.constant 0 : index
    %20 = vector.load %arg8[%c0_17, %c0_18] : memref<1x128xf32, #tpu.memory_space<vmem>>, vector<1x128xf32>
    tpu.vector_store %arg8[%c0_17, %c0_18], %19 {strides = array<i32>} : memref<1x128xf32, #tpu.memory_space<vmem>>, vector<1x128xf32>,
    return
  }
  func.func @transform_0(%arg0: i32) -> (i32, i32) {
    %c0_i32 = arith.constant 0 : i32
    %c0_i32_0 = arith.constant 0 : i32
    return %arg0, %c0_i32 : i32, i32
  }
  func.func @transform_1(%arg0: i32) -> (i32, i32) {
    %c0_i32 = arith.constant 0 : i32
    %c0_i32_0 = arith.constant 0 : i32
    %c0_i32_1 = arith.constant 0 : i32
    return %c0_i32, %c0_i32_0 : i32, i32
  }
  func.func @transform_2(%arg0: i32) -> (i32, i32) {
    %c0_i32 = arith.constant 0 : i32
    %c0_i32_0 = arith.constant 0 : i32
    %c0_i32_1 = arith.constant 0 : i32
    return %c0_i32, %c0_i32_0 : i32, i32
  }
  func.func @transform_3(%arg0: i32) -> (i32, i32) {
    %c0_i32 = arith.constant 0 : i32
    %c0_i32_0 = arith.constant 0 : i32
    %c0_i32_1 = arith.constant 0 : i32
    return %c0_i32, %c0_i32_0 : i32, i32
  }
  func.func @transform_4(%arg0: i32) -> (i32, i32) {
    %c0_i32 = arith.constant 0 : i32
    %c0_i32_0 = arith.constant 0 : i32
    %c0_i32_1 = arith.constant 0 : i32
    return %c0_i32, %c0_i32_0 : i32, i32
  }
  func.func @transform_5(%arg0: i32) -> (i32, i32) {
    %c0_i32 = arith.constant 0 : i32
    %c0_i32_0 = arith.constant 0 : i32
    %c0_i32_1 = arith.constant 0 : i32
    return %c0_i32, %c0_i32_0 : i32, i32
  }
  func.func @transform_6(%arg0: i32) -> (i32, i32) {
    %c0_i32 = arith.constant 0 : i32
    %c0_i32_0 = arith.constant 0 : i32
    %c0_i32_1 = arith.constant 0 : i32
    return %c0_i32, %c0_i32_0 : i32, i32
  }
  func.func @transform_7(%arg0: i32) -> (i32, i32) {
    %c0_i32 = arith.constant 0 : i32
    %c0_i32_0 = arith.constant 0 : i32
    return %c0_i32, %arg0 : i32, i32
  }
}

</mosaic_0001>

<llo_original>
// kernel: model_critic_forward.1
$region0: #{model_critic_forward.1}
  #allocation0 [shape = 'u32[]', space=smem, size = 0x4, offset = 0x4, fixed_abs, tag = 'smem constant byte address 0x4 - core index']
  #allocation1 [shape = 'u32[144,128]{1,0:T(1,128)}', space=vmem, size = 0x12000, scoped, tag = 'internal scratch']
  #allocation2 [shape = 'f32[1,1]{1,0:T(1,128)S(1)}', space=vmem, size = 0x200, scoped, tag = 'scoped memory for model_critic_forward.1']
  %s0 = inlined_call_operand.hbm [shape: f32[8,32], index: 0, kind: input, shape index: {}]
  %s1 = inlined_call_operand.hbm [shape: f32[32,64], index: 1, kind: input, shape index: {}]
  %s2 = inlined_call_operand.vmem [shape: f32[1,64], index: 2, kind: input, shape index: {}]
  %s3 = inlined_call_operand.hbm [shape: f32[64,64], index: 3, kind: input, shape index: {}]
  %s4 = inlined_call_operand.vmem [shape: f32[1,64], index: 4, kind: input, shape index: {}]
  %s5 = inlined_call_operand.vmem [shape: f32[1,64], index: 5, kind: input, shape index: {}]
  %s6 = inlined_call_operand.<no memory space> [shape: f32[1,1], index: 6, kind: input, shape index: {}]
  %s7 = inlined_call_operand.vmem [shape: f32[1,128], index: 7, kind: output, shape index: {}]
  %s8 = sld [smem:[#allocation0]]
  $region50: #{model_critic_forward.1} parent=0
    _
  %s10 = ssub.s32 1, %s8
  %s11 = scalar_select 0, %s10, %s8
  %v12 = vstv %s6
  %13 = vst [vmem:[#allocation2] sm:$0x1] %v12
  $region1: #{model_critic_forward.1} parent=0
    #allocation3 [shape = 'u8[65536]{0}', space=vmem, size = 0x10000, scoped, tag = 'input window, operand 0, single buffered']
    #allocation4 [shape = 's32[1]{0}', space=sflag, size = 0x4, scoped, tag = 'scoped memory for model_critic_forward.1']
    #allocation5 [shape = 'u8[16384]{0}', space=vmem, size = 0x4000, scoped, tag = 'input window, operand 1, single buffered']
    #allocation6 [shape = 's32[1]{0}', space=sflag, size = 0x4, scoped, tag = 'scoped memory for model_critic_forward.1']
    #allocation7 [shape = 'u8[32768]{0}', space=vmem, size = 0x8000, scoped, tag = 'input window, operand 3, single buffered']
    %14 = vsyncpa [#allocation4], 0
    %15 = vsyncpa [#allocation6], 0
    // Predicated region
    $region2: #{model_critic_forward.1} parent=1 // pred_check
      _
    $region3: #{model_critic_forward.1} parent=1 // pred_check_branch
      %17 = sbr.rel (0) target = $region5
    $region4: #{model_critic_forward.1} parent=1 // pred_region
      %s19 = ssub.s32 2048, 128
      %20 = vsyncadd [#allocation4], %s19
      %s21 = sshll.u32 [#allocation3], 4
      %s22 = int_to_ptr.vmem [resolvable:$true] %s21
      %27 = dma.hbm_to_vmem [thread:$0]  %s0, 128, %s22, [#allocation4], 128, 128, 8
    $region5: #{model_critic_forward.1} parent=1 // pred_fallthru
      _
    // Predicated region
    $region6: #{model_critic_forward.1} parent=1 // pred_check
      _
    $region7: #{model_critic_forward.1} parent=1 // pred_check_branch
      %29 = sbr.rel (0) target = $region9
    $region8: #{model_critic_forward.1} parent=1 // pred_region
      %s31 = ssub.s32 512, 512
      %32 = vsyncadd [#allocation6], %s31
      %s33 = sshll.u32 [#allocation5], 4
      %s34 = int_to_ptr.vmem [resolvable:$true] %s33
      %39 = dma.hbm_to_vmem [thread:$0]  %s1, 512, %s34, [#allocation6], 128, 128, 8
    $region9: #{model_critic_forward.1} parent=1 // pred_fallthru
      _
    // Predicated region
    $region10: #{model_critic_forward.1} parent=1 // pred_check
      _
    $region11: #{model_critic_forward.1} parent=1 // pred_check_branch
      %41 = sbr.rel (0) target = $region13
    $region12: #{model_critic_forward.1} parent=1 // pred_region
      _
    $region13: #{model_critic_forward.1} parent=1 // pred_fallthru
      _
    // Predicated region
    $region14: #{model_critic_forward.1} parent=1 // pred_check
      _
    $region15: #{model_critic_forward.1} parent=1 // pred_check_branch
      %43 = sbr.rel (0) target = $region17
    $region16: #{model_critic_forward.1} parent=1 // pred_region
      %s45 = ssub.s32 1024, 1024
      %46 = vsyncadd [#allocation6], %s45
      %s47 = sshll.u32 [#allocation7], 4
      %s48 = int_to_ptr.vmem [resolvable:$true] %s47
      %53 = dma.hbm_to_vmem [thread:$0]  %s3, 1024, %s48, [#allocation6], 128, 128, 8
    $region17: #{model_critic_forward.1} parent=1 // pred_fallthru
      _
    // Predicated region
    $region18: #{model_critic_forward.1} parent=1 // pred_check
      _
    $region19: #{model_critic_forward.1} parent=1 // pred_check_branch
      %55 = sbr.rel (0) target = $region21
    $region20: #{model_critic_forward.1} parent=1 // pred_region
      _
    $region21: #{model_critic_forward.1} parent=1 // pred_fallthru
      _
    // Predicated region
    $region22: #{model_critic_forward.1} parent=1 // pred_check
      _
    $region23: #{model_critic_forward.1} parent=1 // pred_check_branch
      %57 = sbr.rel (0) target = $region25
    $region24: #{model_critic_forward.1} parent=1 // pred_region
      _
    $region25: #{model_critic_forward.1} parent=1 // pred_fallthru
      _
    // Predicated region
    $region26: #{model_critic_forward.1} parent=1 // pred_check
      _
    $region27: #{model_critic_forward.1} parent=1 // pred_check_branch
      %59 = sbr.rel (0) target = $region29
    $region28: #{model_critic_forward.1} parent=1 // pred_region
      _
    $region29: #{model_critic_forward.1} parent=1 // pred_fallthru
      _
    // Predicated region
    $region30: #{model_critic_forward.1} parent=1 // pred_check
      _
    $region31: #{model_critic_forward.1} parent=1 // pred_check_branch
      %61 = sbr.rel (0) target = $region33
    $region32: #{model_critic_forward.1} parent=1 // pred_region
      %62 = dma.done [#allocation4], 2048
    $region33: #{model_critic_forward.1} parent=1 // pred_fallthru
      _
    // Predicated region
    $region34: #{model_critic_forward.1} parent=1 // pred_check
      _
    $region35: #{model_critic_forward.1} parent=1 // pred_check_branch
      %64 = sbr.rel (0) target = $region37
    $region36: #{model_critic_forward.1} parent=1 // pred_region
      %65 = dma.done [#allocation6], 512
    $region37: #{model_critic_forward.1} parent=1 // pred_fallthru
      _
    // Predicated region
    $region38: #{model_critic_forward.1} parent=1 // pred_check
      _
    $region39: #{model_critic_forward.1} parent=1 // pred_check_branch
      %67 = sbr.rel (0) target = $region41
    $region40: #{model_critic_forward.1} parent=1 // pred_region
      %68 = dma.done [#allocation6], 1024
    $region41: #{model_critic_forward.1} parent=1 // pred_fallthru
      _
    %v69 = vld [vmem:[#allocation3] sm:$0xff]
    %v70 = vld [vmem:[#allocation3 + $0x8] sm:$0xff]
    %v71 = vld [vmem:[#allocation3 + $0x10] sm:$0xff]
    %v72 = vld [vmem:[#allocation3 + $0x18] sm:$0xff]
    %v73 = vld [vmem:[#allocation3 + $0x20] sm:$0xff]
    %v74 = vld [vmem:[#allocation3 + $0x28] sm:$0xff]
    %v75 = vld [vmem:[#allocation3 + $0x30] sm:$0xff]
    %v76 = vld [vmem:[#allocation3 + $0x38] sm:$0xff]
    %v77 = vld [vmem:[#allocation3 + $0x40] sm:$0xff]
    %v78 = vld [vmem:[#allocation3 + $0x48] sm:$0xff]
    %v79 = vld [vmem:[#allocation3 + $0x50] sm:$0xff]
    %v80 = vld [vmem:[#allocation3 + $0x58] sm:$0xff]
    %v81 = vld [vmem:[#allocation3 + $0x60] sm:$0xff]
    %v82 = vld [vmem:[#allocation3 + $0x68] sm:$0xff]
    %v83 = vld [vmem:[#allocation3 + $0x70] sm:$0xff]
    %v84 = vld [vmem:[#allocation3 + $0x78] sm:$0xff]
    %v85 = vld [vmem:[#allocation5] sm:$0xff]
    %v86 = vld [vmem:[#allocation5 + $0x8] sm:$0xff]
    %v87 = vld [vmem:[#allocation5 + $0x10] sm:$0xff]
    %v88 = vld [vmem:[#allocation5 + $0x18] sm:$0xff]
    %v89 = vld [vmem:[%s2] sm:$0x1]
    %v91 = vlaneseq
    %v92 = vshrl.u32 %v91, 7
    %v93 = vsub.s32 0, %v92
    %v94 = vrot.slane %v89, %v93
    %vm96 = vcmask 261120
    %v98 = vsel %vm96, %v69, 0
    %v101 = vsel %vm96, %v70, 0
    %v104 = vsel %vm96, %v71, 0
    %v107 = vsel %vm96, %v72, 0
    %v110 = vsel %vm96, %v73, 0
    %v113 = vsel %vm96, %v74, 0
    %v116 = vsel %vm96, %v75, 0
    %v119 = vsel %vm96, %v76, 0
    %v122 = vsel %vm96, %v77, 0
    %v125 = vsel %vm96, %v78, 0
    %v128 = vsel %vm96, %v79, 0
    %v131 = vsel %vm96, %v80, 0
    %v134 = vsel %vm96, %v81, 0
    %v137 = vsel %vm96, %v82, 0
    %v140 = vsel %vm96, %v83, 0
    %v143 = vsel %vm96, %v84, 0
    %145 = vmatprep.subr.mxu0 0.0
    %146 = vmatpush1.msra.mxu0 0.0
    %147 = vmatprep.subr.mxu0 0.0
    %148 = vmatpush1.msra.mxu0 0.0
    %149 = vmatprep.subr.mxu0 0.0
    %150 = vmatpush1.msra.mxu0 0.0
    %151 = vmatprep.subr.mxu0 0.0
    %152 = vmatpush1.msra.mxu0 0.0
    %153 = vmatprep.subr.mxu0 0.0
    %154 = vmatpush1.msra.mxu0 0.0
    %155 = vmatprep.subr.mxu0 0.0
    %156 = vmatpush1.msra.mxu0 0.0
    %157 = vmatprep.subr.mxu0 0.0
    %158 = vmatpush1.msra.mxu0 0.0
    %159 = vmatprep.subr.mxu0 0.0
    %160 = vmatpush1.msra.mxu0 0.0
    %161 = vmatprep.subr.mxu0 0.0
    %162 = vmatpush1.msra.mxu0 0.0
    %163 = vmatprep.subr.mxu0 0.0
    %164 = vmatpush1.msra.mxu0 0.0
    %165 = vmatprep.subr.mxu0 0.0
    %166 = vmatpush1.msra.mxu0 0.0
    %167 = vmatprep.subr.mxu0 0.0
    %168 = vmatpush1.msra.mxu0 0.0
    %169 = vmatprep.subr.mxu0 0.0
    %170 = vmatpush1.msra.mxu0 %v88
    %171 = vmatprep.subr.mxu0 0.0
    %172 = vmatpush1.msra.mxu0 %v87
    %173 = vmatprep.subr.mxu0 0.0
    %174 = vmatpush1.msra.mxu0 %v86
    %175 = vmatprep.subr.mxu0 0.0
    %176 = vmatpush1.msra.mxu0 %v85
    %177 = vmatprep.subr.mxu0 0.0
    %178 = vmatpush2.msra.mxu0 0.0
    %179 = vmatprep.subr.mxu0 0.0
    %180 = vmatpush2.msra.mxu0 0.0
    %181 = vmatprep.subr.mxu0 0.0
    %182 = vmatpush2.msra.mxu0 0.0
    %183 = vmatprep.subr.mxu0 0.0
    %184 = vmatpush2.msra.mxu0 0.0
    %185 = vmatprep.subr.mxu0 0.0
    %186 = vmatpush2.msra.mxu0 0.0
    %187 = vmatprep.subr.mxu0 0.0
    %188 = vmatpush2.msra.mxu0 0.0
    %189 = vmatprep.subr.mxu0 0.0
    %190 = vmatpush2.msra.mxu0 0.0
    %191 = vmatprep.subr.mxu0 0.0
    %192 = vmatpush2.msra.mxu0 0.0
    %193 = vmatprep.subr.mxu0 0.0
    %194 = vmatpush2.msra.mxu0 0.0
    %195 = vmatprep.subr.mxu0 0.0
    %196 = vmatpush2.msra.mxu0 0.0
    %197 = vmatprep.subr.mxu0 0.0
    %198 = vmatpush2.msra.mxu0 0.0
    %199 = vmatprep.subr.mxu0 0.0
    %200 = vmatpush2.msra.mxu0 0.0
    %201 = vmatprep.subr.mxu0 0.0
    %202 = vmatpush2.msra.mxu0 0.0
    %203 = vmatprep.subr.mxu0 0.0
    %204 = vmatpush2.msra.mxu0 0.0
    %205 = vmatprep.subr.mxu0 0.0
    %206 = vmatpush2.msra.mxu0 0.0
    %207 = vmatprep.subr.mxu0 0.0
    %208 = vmatpush2.msra.mxu0 0.0
    %209 = vmatprep.mubr.f32.mxu0 0.0
    %210 = vmatmul.mubr.f32.gmra.mxu0 %v98
    %v211 = vpop.f32.mrf.mxu0
    %v212 = vadd.f32 %v94, %v211
    %v213 = vpop.f32.mrf.mxu0
    %214 = vmatprep.mubr.f32.mxu0 0.0
    %215 = vmatmul.mubr.f32.gmra.mxu0 %v101
    %v216 = vpop.f32.mrf.mxu0
    %v217 = vadd.f32 %v94, %v216
    %v218 = vpop.f32.mrf.mxu0
    %219 = vmatprep.mubr.f32.mxu0 0.0
    %220 = vmatmul.mubr.f32.gmra.mxu0 %v104
    %v221 = vpop.f32.mrf.mxu0
    %v222 = vadd.f32 %v94, %v221
    %v223 = vpop.f32.mrf.mxu0
    %224 = vmatprep.mubr.f32.mxu0 0.0
    %225 = vmatmul.mubr.f32.gmra.mxu0 %v107
    %v226 = vpop.f32.mrf.mxu0
    %v227 = vadd.f32 %v94, %v226
    %v228 = vpop.f32.mrf.mxu0
    %229 = vmatprep.mubr.f32.mxu0 0.0
    %230 = vmatmul.mubr.f32.gmra.mxu0 %v110
    %v231 = vpop.f32.mrf.mxu0
    %v232 = vadd.f32 %v94, %v231
    %v233 = vpop.f32.mrf.mxu0
    %234 = vmatprep.mubr.f32.mxu0 0.0
    %235 = vmatmul.mubr.f32.gmra.mxu0 %v113
    %v236 = vpop.f32.mrf.mxu0
    %v237 = vadd.f32 %v94, %v236
    %v238 = vpop.f32.mrf.mxu0
    %239 = vmatprep.mubr.f32.mxu0 0.0
    %240 = vmatmul.mubr.f32.gmra.mxu0 %v116
    %v241 = vpop.f32.mrf.mxu0
    %v242 = vadd.f32 %v94, %v241
    %v243 = vpop.f32.mrf.mxu0
    %244 = vmatprep.mubr.f32.mxu0 0.0
    %245 = vmatmul.mubr.f32.gmra.mxu0 %v119
    %v246 = vpop.f32.mrf.mxu0
    %v247 = vadd.f32 %v94, %v246
    %v248 = vpop.f32.mrf.mxu0
    %249 = vmatprep.mubr.f32.mxu0 0.0
    %250 = vmatmul.mubr.f32.gmra.mxu0 %v122
    %v251 = vpop.f32.mrf.mxu0
    %v252 = vadd.f32 %v94, %v251
    %v253 = vpop.f32.mrf.mxu0
    %254 = vmatprep.mubr.f32.mxu0 0.0
    %255 = vmatmul.mubr.f32.gmra.mxu0 %v125
    %v256 = vpop.f32.mrf.mxu0
    %v257 = vadd.f32 %v94, %v256
    %v258 = vpop.f32.mrf.mxu0
    %259 = vmatprep.mubr.f32.mxu0 0.0
    %260 = vmatmul.mubr.f32.gmra.mxu0 %v128
    %v261 = vpop.f32.mrf.mxu0
    %v262 = vadd.f32 %v94, %v261
    %v263 = vpop.f32.mrf.mxu0
    %264 = vmatprep.mubr.f32.mxu0 0.0
    %265 = vmatmul.mubr.f32.gmra.mxu0 %v131
    %v266 = vpop.f32.mrf.mxu0
    %v267 = vadd.f32 %v94, %v266
    %v268 = vpop.f32.mrf.mxu0
    %269 = vmatprep.mubr.f32.mxu0 0.0
    %270 = vmatmul.mubr.f32.gmra.mxu0 %v134
    %v271 = vpop.f32.mrf.mxu0
    %v272 = vadd.f32 %v94, %v271
    %v273 = vpop.f32.mrf.mxu0
    %274 = vmatprep.mubr.f32.mxu0 0.0
    %275 = vmatmul.mubr.f32.gmra.mxu0 %v137
    %v276 = vpop.f32.mrf.mxu0
    %v277 = vadd.f32 %v94, %v276
    %v278 = vpop.f32.mrf.mxu0
    %279 = vmatprep.mubr.f32.mxu0 0.0
    %280 = vmatmul.mubr.f32.gmra.mxu0 %v140
    %v281 = vpop.f32.mrf.mxu0
    %v282 = vadd.f32 %v94, %v281
    %v283 = vpop.f32.mrf.mxu0
    %284 = vmatprep.mubr.f32.mxu0 0.0
    %285 = vmatmul.mubr.f32.gmra.mxu0 %v143
    %v286 = vpop.f32.mrf.mxu0
    %v287 = vadd.f32 %v94, %v286
    %v288 = vpop.f32.mrf.mxu0
    %289 = vdwg.mxu0
    %v290 = vmax.f32 %v212, 0.0
    %v291 = vmax.f32 %v217, 0.0
    %v292 = vmax.f32 %v222, 0.0
    %v293 = vmax.f32 %v227, 0.0
    %v294 = vmax.f32 %v232, 0.0
    %v295 = vmax.f32 %v237, 0.0
    %v296 = vmax.f32 %v242, 0.0
    %v297 = vmax.f32 %v247, 0.0
    %v298 = vmax.f32 %v252, 0.0
    %v299 = vmax.f32 %v257, 0.0
    %v300 = vmax.f32 %v262, 0.0
    %v301 = vmax.f32 %v267, 0.0
    %v302 = vmax.f32 %v272, 0.0
    %v303 = vmax.f32 %v277, 0.0
    %v304 = vmax.f32 %v282, 0.0
    %v305 = vmax.f32 %v287, 0.0
    %v306 = vld [vmem:[#allocation7] sm:$0xff]
    %v307 = vld [vmem:[#allocation7 + $0x8] sm:$0xff]
    %v308 = vld [vmem:[#allocation7 + $0x10] sm:$0xff]
    %v309 = vld [vmem:[#allocation7 + $0x18] sm:$0xff]
    %v310 = vld [vmem:[#allocation7 + $0x20] sm:$0xff]
    %v311 = vld [vmem:[#allocation7 + $0x28] sm:$0xff]
    %v312 = vld [vmem:[#allocation7 + $0x30] sm:$0xff]
    %v313 = vld [vmem:[#allocation7 + $0x38] sm:$0xff]
    %v314 = vld [vmem:[%s4] sm:$0x1]
    %v316 = vlaneseq
    %v317 = vshrl.u32 %v316, 7
    %v318 = vsub.s32 0, %v317
    %v319 = vrot.slane %v314, %v318
    %vm321 = vcmask 523264
    %v323 = vsel %vm321, %v290, 0
    %v326 = vsel %vm321, %v291, 0
    %v329 = vsel %vm321, %v292, 0
    %v332 = vsel %vm321, %v293, 0
    %v335 = vsel %vm321, %v294, 0
    %v338 = vsel %vm321, %v295, 0
    %v341 = vsel %vm321, %v296, 0
    %v344 = vsel %vm321, %v297, 0
    %v347 = vsel %vm321, %v298, 0
    %v350 = vsel %vm321, %v299, 0
    %v353 = vsel %vm321, %v300, 0
    %v356 = vsel %vm321, %v301, 0
    %v359 = vsel %vm321, %v302, 0
    %v362 = vsel %vm321, %v303, 0
    %v365 = vsel %vm321, %v304, 0
    %v368 = vsel %vm321, %v305, 0
    %370 = vmatprep.subr.mxu0 0.0
    %371 = vmatpush1.msra.mxu0 0.0
    %372 = vmatprep.subr.mxu0 0.0
    %373 = vmatpush1.msra.mxu0 0.0
    %374 = vmatprep.subr.mxu0 0.0
    %375 = vmatpush1.msra.mxu0 0.0
    %376 = vmatprep.subr.mxu0 0.0
    %377 = vmatpush1.msra.mxu0 0.0
    %378 = vmatprep.subr.mxu0 0.0
    %379 = vmatpush1.msra.mxu0 0.0
    %380 = vmatprep.subr.mxu0 0.0
    %381 = vmatpush1.msra.mxu0 0.0
    %382 = vmatprep.subr.mxu0 0.0
    %383 = vmatpush1.msra.mxu0 0.0
    %384 = vmatprep.subr.mxu0 0.0
    %385 = vmatpush1.msra.mxu0 0.0
    %386 = vmatprep.subr.mxu0 0.0
    %387 = vmatpush1.msra.mxu0 %v313
    %388 = vmatprep.subr.mxu0 0.0
    %389 = vmatpush1.msra.mxu0 %v312
    %390 = vmatprep.subr.mxu0 0.0
    %391 = vmatpush1.msra.mxu0 %v311
    %392 = vmatprep.subr.mxu0 0.0
    %393 = vmatpush1.msra.mxu0 %v310
    %394 = vmatprep.subr.mxu0 0.0
    %395 = vmatpush1.msra.mxu0 %v309
    %396 = vmatprep.subr.mxu0 0.0
    %397 = vmatpush1.msra.mxu0 %v308
    %398 = vmatprep.subr.mxu0 0.0
    %399 = vmatpush1.msra.mxu0 %v307
    %400 = vmatprep.subr.mxu0 0.0
    %401 = vmatpush1.msra.mxu0 %v306
    %402 = vmatprep.subr.mxu0 0.0
    %403 = vmatpush2.msra.mxu0 0.0
    %404 = vmatprep.subr.mxu0 0.0
    %405 = vmatpush2.msra.mxu0 0.0
    %406 = vmatprep.subr.mxu0 0.0
    %407 = vmatpush2.msra.mxu0 0.0
    %408 = vmatprep.subr.mxu0 0.0
    %409 = vmatpush2.msra.mxu0 0.0
    %410 = vmatprep.subr.mxu0 0.0
    %411 = vmatpush2.msra.mxu0 0.0
    %412 = vmatprep.subr.mxu0 0.0
    %413 = vmatpush2.msra.mxu0 0.0
    %414 = vmatprep.subr.mxu0 0.0
    %415 = vmatpush2.msra.mxu0 0.0
    %416 = vmatprep.subr.mxu0 0.0
    %417 = vmatpush2.msra.mxu0 0.0
    %418 = vmatprep.subr.mxu0 0.0
    %419 = vmatpush2.msra.mxu0 0.0
    %420 = vmatprep.subr.mxu0 0.0
    %421 = vmatpush2.msra.mxu0 0.0
    %422 = vmatprep.subr.mxu0 0.0
    %423 = vmatpush2.msra.mxu0 0.0
    %424 = vmatprep.subr.mxu0 0.0
    %425 = vmatpush2.msra.mxu0 0.0
    %426 = vmatprep.subr.mxu0 0.0
    %427 = vmatpush2.msra.mxu0 0.0
    %428 = vmatprep.subr.mxu0 0.0
    %429 = vmatpush2.msra.mxu0 0.0
    %430 = vmatprep.subr.mxu0 0.0
    %431 = vmatpush2.msra.mxu0 0.0
    %432 = vmatprep.subr.mxu0 0.0
    %433 = vmatpush2.msra.mxu0 0.0
    %434 = vmatprep.mubr.f32.mxu0 0.0
    %435 = vmatmul.mubr.f32.gmra.mxu0 %v323
    %v436 = vpop.f32.mrf.mxu0
    %v437 = vadd.f32 %v319, %v436
    %v438 = vpop.f32.mrf.mxu0
    %439 = vmatprep.mubr.f32.mxu0 0.0
    %440 = vmatmul.mubr.f32.gmra.mxu0 %v326
    %v441 = vpop.f32.mrf.mxu0
    %v442 = vadd.f32 %v319, %v441
    %v443 = vpop.f32.mrf.mxu0
    %444 = vmatprep.mubr.f32.mxu0 0.0
    %445 = vmatmul.mubr.f32.gmra.mxu0 %v329
    %v446 = vpop.f32.mrf.mxu0
    %v447 = vadd.f32 %v319, %v446
    %v448 = vpop.f32.mrf.mxu0
    %449 = vmatprep.mubr.f32.mxu0 0.0
    %450 = vmatmul.mubr.f32.gmra.mxu0 %v332
    %v451 = vpop.f32.mrf.mxu0
    %v452 = vadd.f32 %v319, %v451
    %v453 = vpop.f32.mrf.mxu0
    %454 = vmatprep.mubr.f32.mxu0 0.0
    %455 = vmatmul.mubr.f32.gmra.mxu0 %v335
    %v456 = vpop.f32.mrf.mxu0
    %v457 = vadd.f32 %v319, %v456
    %v458 = vpop.f32.mrf.mxu0
    %459 = vmatprep.mubr.f32.mxu0 0.0
    %460 = vmatmul.mubr.f32.gmra.mxu0 %v338
    %v461 = vpop.f32.mrf.mxu0
    %v462 = vadd.f32 %v319, %v461
    %v463 = vpop.f32.mrf.mxu0
    %464 = vmatprep.mubr.f32.mxu0 0.0
    %465 = vmatmul.mubr.f32.gmra.mxu0 %v341
    %v466 = vpop.f32.mrf.mxu0
    %v467 = vadd.f32 %v319, %v466
    %v468 = vpop.f32.mrf.mxu0
    %469 = vmatprep.mubr.f32.mxu0 0.0
    %470 = vmatmul.mubr.f32.gmra.mxu0 %v344
    %v471 = vpop.f32.mrf.mxu0
    %v472 = vadd.f32 %v319, %v471
    %v473 = vpop.f32.mrf.mxu0
    %474 = vmatprep.mubr.f32.mxu0 0.0
    %475 = vmatmul.mubr.f32.gmra.mxu0 %v347
    %v476 = vpop.f32.mrf.mxu0
    %v477 = vadd.f32 %v319, %v476
    %v478 = vpop.f32.mrf.mxu0
    %479 = vmatprep.mubr.f32.mxu0 0.0
    %480 = vmatmul.mubr.f32.gmra.mxu0 %v350
    %v481 = vpop.f32.mrf.mxu0
    %v482 = vadd.f32 %v319, %v481
    %v483 = vpop.f32.mrf.mxu0
    %484 = vmatprep.mubr.f32.mxu0 0.0
    %485 = vmatmul.mubr.f32.gmra.mxu0 %v353
    %v486 = vpop.f32.mrf.mxu0
    %v487 = vadd.f32 %v319, %v486
    %v488 = vpop.f32.mrf.mxu0
    %489 = vmatprep.mubr.f32.mxu0 0.0
    %490 = vmatmul.mubr.f32.gmra.mxu0 %v356
    %v491 = vpop.f32.mrf.mxu0
    %v492 = vadd.f32 %v319, %v491
    %v493 = vpop.f32.mrf.mxu0
    %494 = vmatprep.mubr.f32.mxu0 0.0
    %495 = vmatmul.mubr.f32.gmra.mxu0 %v359
    %v496 = vpop.f32.mrf.mxu0
    %v497 = vadd.f32 %v319, %v496
    %v498 = vpop.f32.mrf.mxu0
    %499 = vmatprep.mubr.f32.mxu0 0.0
    %500 = vmatmul.mubr.f32.gmra.mxu0 %v362
    %v501 = vpop.f32.mrf.mxu0
    %v502 = vadd.f32 %v319, %v501
    %v503 = vpop.f32.mrf.mxu0
    %504 = vmatprep.mubr.f32.mxu0 0.0
    %505 = vmatmul.mubr.f32.gmra.mxu0 %v365
    %v506 = vpop.f32.mrf.mxu0
    %v507 = vadd.f32 %v319, %v506
    %v508 = vpop.f32.mrf.mxu0
    %509 = vmatprep.mubr.f32.mxu0 0.0
    %510 = vmatmul.mubr.f32.gmra.mxu0 %v368
    %v511 = vpop.f32.mrf.mxu0
    %v512 = vadd.f32 %v319, %v511
    %v513 = vpop.f32.mrf.mxu0
    %514 = vdwg.mxu0
    %v515 = vmax.f32 %v437, 0.0
    %v516 = vmax.f32 %v442, 0.0
    %v517 = vmax.f32 %v447, 0.0
    %v518 = vmax.f32 %v452, 0.0
    %v519 = vmax.f32 %v457, 0.0
    %v520 = vmax.f32 %v462, 0.0
    %v521 = vmax.f32 %v467, 0.0
    %v522 = vmax.f32 %v472, 0.0
    %v523 = vmax.f32 %v477, 0.0
    %v524 = vmax.f32 %v482, 0.0
    %v525 = vmax.f32 %v487, 0.0
    %v526 = vmax.f32 %v492, 0.0
    %v527 = vmax.f32 %v497, 0.0
    %v528 = vmax.f32 %v502, 0.0
    %v529 = vmax.f32 %v507, 0.0
    %v530 = vmax.f32 %v512, 0.0
    %v531 = vld [vmem:[%s5] sm:$0x1]
    %v532 = vld [vmem:[#allocation2] sm:$0x1]
    %534 = vset.pattern.permute.xlu0 0
    %535 = vperm.xlu0 %534, %v532
    %v536 = vpop.permute.xlu0 %535
    %v538 = vlaneseq
    %v539 = vshrl.u32 %v538, 7
    %v540 = vsub.s32 0, %v539
    %v541 = vrot.slane %v536, %v540
    %v543 = vsel %vm321, %v531, 0
    %v546 = vsel %vm321, %v515, 0
    %v549 = vsel %vm321, %v516, 0
    %v552 = vsel %vm321, %v517, 0
    %v555 = vsel %vm321, %v518, 0
    %v558 = vsel %vm321, %v519, 0
    %v561 = vsel %vm321, %v520, 0
    %v564 = vsel %vm321, %v521, 0
    %v567 = vsel %vm321, %v522, 0
    %v570 = vsel %vm321, %v523, 0
    %v573 = vsel %vm321, %v524, 0
    %v576 = vsel %vm321, %v525, 0
    %v579 = vsel %vm321, %v526, 0
    %v582 = vsel %vm321, %v527, 0
    %v585 = vsel %vm321, %v528, 0
    %v588 = vsel %vm321, %v529, 0
    %v591 = vsel %vm321, %v530, 0
    %593 = vmatprep.subr.mxu0 0.0
    %594 = vmatpush1.xpose.msra.mxu0 %v591
    %595 = vmatprep.subr.mxu0 0.0
    %596 = vmatpush1.xpose.msra.mxu0 %v588
    %597 = vmatprep.subr.mxu0 0.0
    %598 = vmatpush1.xpose.msra.mxu0 %v585
    %599 = vmatprep.subr.mxu0 0.0
    %600 = vmatpush1.xpose.msra.mxu0 %v582
    %601 = vmatprep.subr.mxu0 0.0
    %602 = vmatpush1.xpose.msra.mxu0 %v579
    %603 = vmatprep.subr.mxu0 0.0
    %604 = vmatpush1.xpose.msra.mxu0 %v576
    %605 = vmatprep.subr.mxu0 0.0
    %606 = vmatpush1.xpose.msra.mxu0 %v573
    %607 = vmatprep.subr.mxu0 0.0
    %608 = vmatpush1.xpose.msra.mxu0 %v570
    %609 = vmatprep.subr.mxu0 0.0
    %610 = vmatpush1.xpose.msra.mxu0 %v567
    %611 = vmatprep.subr.mxu0 0.0
    %612 = vmatpush1.xpose.msra.mxu0 %v564
    %613 = vmatprep.subr.mxu0 0.0
    %614 = vmatpush1.xpose.msra.mxu0 %v561
    %615 = vmatprep.subr.mxu0 0.0
    %616 = vmatpush1.xpose.msra.mxu0 %v558
    %617 = vmatprep.subr.mxu0 0.0
    %618 = vmatpush1.xpose.msra.mxu0 %v555
    %619 = vmatprep.subr.mxu0 0.0
    %620 = vmatpush1.xpose.msra.mxu0 %v552
    %621 = vmatprep.subr.mxu0 0.0
    %622 = vmatpush1.xpose.msra.mxu0 %v549
    %623 = vmatprep.subr.mxu0 0.0
    %624 = vmatpush1.xpose.msra.mxu0 %v546
    %625 = vmatprep.subr.mxu0 0.0
    %626 = vmatpush2.xpose.msra.mxu0 0.0
    %627 = vmatprep.subr.mxu0 0.0
    %628 = vmatpush2.xpose.msra.mxu0 0.0
    %629 = vmatprep.subr.mxu0 0.0
    %630 = vmatpush2.xpose.msra.mxu0 0.0
    %631 = vmatprep.subr.mxu0 0.0
    %632 = vmatpush2.xpose.msra.mxu0 0.0
    %633 = vmatprep.subr.mxu0 0.0
    %634 = vmatpush2.xpose.msra.mxu0 0.0
    %635 = vmatprep.subr.mxu0 0.0
    %636 = vmatpush2.xpose.msra.mxu0 0.0
    %637 = vmatprep.subr.mxu0 0.0
    %638 = vmatpush2.xpose.msra.mxu0 0.0
    %639 = vmatprep.subr.mxu0 0.0
    %640 = vmatpush2.xpose.msra.mxu0 0.0
    %641 = vmatprep.subr.mxu0 0.0
    %642 = vmatpush2.xpose.msra.mxu0 0.0
    %643 = vmatprep.subr.mxu0 0.0
    %644 = vmatpush2.xpose.msra.mxu0 0.0
    %645 = vmatprep.subr.mxu0 0.0
    %646 = vmatpush2.xpose.msra.mxu0 0.0
    %647 = vmatprep.subr.mxu0 0.0
    %648 = vmatpush2.xpose.msra.mxu0 0.0
    %649 = vmatprep.subr.mxu0 0.0
    %650 = vmatpush2.xpose.msra.mxu0 0.0
    %651 = vmatprep.subr.mxu0 0.0
    %652 = vmatpush2.xpose.msra.mxu0 0.0
    %653 = vmatprep.subr.mxu0 0.0
    %654 = vmatpush2.xpose.msra.mxu0 0.0
    %655 = vmatprep.subr.mxu0 0.0
    %656 = vmatpush2.xpose.msra.mxu0 0.0
    %657 = vmatprep.mubr.f32.mxu0 0.0
    %658 = vmatmul.mubr.f32.gmra.mxu0 %v543
    %v659 = vpop.f32.mrf.mxu0
    %v660 = vadd.f32 %v541, %v659
    %v661 = vpop.f32.mrf.mxu0
    %662 = vdwg.mxu0
    %663 = vst [vmem:[%s7] sm:$0x1] %v660
    // Predicated region
    $region42: #{model_critic_forward.1} parent=1 // pred_check
      _
    $region43: #{model_critic_forward.1} parent=1 // pred_check_branch
      %665 = sbr.rel (0) target = $region45
    $region44: #{model_critic_forward.1} parent=1 // pred_region
      _
    $region45: #{model_critic_forward.1} parent=1 // pred_fallthru
      _
    // Predicated region
    $region46: #{model_critic_forward.1} parent=1 // pred_check
      _
    $region47: #{model_critic_forward.1} parent=1 // pred_check_branch
      %667 = sbr.rel (0) target = $region49
    $region48: #{model_critic_forward.1} parent=1 // pred_region
      _
    $region49: #{model_critic_forward.1} parent=1 // pred_fallthru
      _
    %668 = vsyncpa [#allocation4], 1
    %669 = vsyncpa [#allocation6], 1

</llo_original>
